<compile_context>
chip_gen: v5e
topology: v5e:2x2
jax: 0.10.0
libtpu: 0.0.40
codegen_flags: <defaults>
</compile_context>

<pallas_src>
from functools import partial

import jax
import jax.numpy as jnp
from jax.experimental import pallas as pl
from jax.experimental.pallas import tpu as pltpu


_TARGET_BLOCK_BYTES = 1 << 20  # ~1 MiB blocks: ~85% of HBM roofline on v6e


def _round_up(a, b):
    return ((a + b - 1) // b) * b


def _choose_tiling(total, itemsize):
    """Pick a lane-dense (rows, lane) layout and a block row count."""
    # dtype-aware sublane multiple: f32 -> 8, bf16 -> 16, int8/fp8 -> 32
    sub = {4: 8, 2: 16, 1: 32}.get(itemsize, 8)
    lane = 512 if total >= 512 * sub else 128        # multiple of 128 lanes
    rows = _round_up(pl.cdiv(total, lane), sub)

    # target ~1 MiB per block
    target_rows = max(sub, ((_TARGET_BLOCK_BYTES // itemsize) // lane) // sub * sub)
    if rows >= 2 * sub:
        # keep at least 2 grid steps so the "parallel" axis can shard across
        # both TensorCores on v7x
        target_rows = min(target_rows, _round_up(pl.cdiv(rows, 2), sub))
    block_rows = min(target_rows, rows)

    rows = _round_up(rows, block_rows)               # pad rows, never one giant block
    return rows, lane, block_rows


def _flatten_pad(arr, rows, lane):
    total = arr.size
    flat = arr.reshape(-1)
    padded = rows * lane
    if padded != total:
        flat = jnp.pad(flat, (0, padded - total))
    return flat.reshape(rows, lane)


# ---------------- kernels ----------------

def _fused_residual_kernel(fn, x_ref, o_ref):
    # out = fn(x) + x, fully fused: one HBM read of x, one HBM write of out
    x = x_ref[...]
    o_ref[...] = fn(x) + x


def _residual_add_kernel(fx_ref, x_ref, o_ref):
    # generic path: fn was computed in JAX, only the residual add runs here
    o_ref[...] = fx_ref[...] + x_ref[...]


# ---------------- wrappers ----------------

def _residual_fused(x, fn):
    shape, dtype, total = x.shape, x.dtype, x.size
    rows, lane, br = _choose_tiling(total, jnp.dtype(dtype).itemsize)
    x2 = _flatten_pad(x, rows, lane)

    out2 = pl.pallas_call(
        partial(_fused_residual_kernel, fn),
        out_shape=jax.ShapeDtypeStruct((rows, lane), dtype),
        grid=(rows // br,),
        in_specs=[pl.BlockSpec((br, lane), lambda i: (i, 0))],
        out_specs=pl.BlockSpec((br, lane), lambda i: (i, 0)),
        compiler_params=pltpu.CompilerParams(
            dimension_semantics=("parallel",)),
    )(x2)
    return out2.reshape(-1)[:total].reshape(shape)


def _residual_add(fx, x):
    assert fx.shape == x.shape and fx.dtype == x.dtype
    shape, dtype, total = x.shape, x.dtype, x.size
    rows, lane, br = _choose_tiling(total, jnp.dtype(dtype).itemsize)
    fx2 = _flatten_pad(fx, rows, lane)   # intermediate; safe to donate below
    x2 = _flatten_pad(x, rows, lane)

    out2 = pl.pallas_call(
        _residual_add_kernel,
        out_shape=jax.ShapeDtypeStruct((rows, lane), dtype),
        grid=(rows // br,),
        in_specs=[pl.BlockSpec((br, lane), lambda i: (i, 0)),
                  pl.BlockSpec((br, lane), lambda i: (i, 0))],
        out_specs=pl.BlockSpec((br, lane), lambda i: (i, 0)),
        input_output_aliases={0: 0},  # reuse fx's buffer for the output
        compiler_params=pltpu.CompilerParams(
            dimension_semantics=("parallel",)),
    )(fx2, x2)
    return out2.reshape(-1)[:total].reshape(shape)


class Residual:
    """JAX/Pallas equivalent of histoGAN Residual: forward(x) = fn(x) + x.

    fuse=True  -> fn is element-wise and traced inside the Pallas kernel.
    fuse=False -> fn runs as ordinary JAX; the residual add is the Pallas kernel.
    """

    def __init__(self, fn, fuse=False):
        self.fn = fn
        self.fuse = fuse

    def __call__(self, x):
        if self.fuse:
            return _residual_fused(x, self.fn)
        return _residual_add(self.fn(x), x)


if __name__ == "__main__":
    key = jax.random.PRNGKey(0)
    k1, k2 = jax.random.split(key)

    fn = lambda t: jax.nn.leaky_relu(t, negative_slope=0.2)

    # 1) fused path: leaky_relu + residual add in a single Pallas kernel
    x = jax.random.normal(k1, (2, 4, 16, 16), dtype=jnp.float32)
    res_fused = Residual(fn, fuse=True)
    out = jax.block_until_ready(jax.jit(res_fused)(x))
    ref = fn(x) + x
    assert out.shape == x.shape and out.dtype == x.dtype
    assert jnp.allclose(out, ref, atol=1e-6, rtol=1e-6)

    # 2) generic (unfused) path on a ragged shape (exercises padded-tail tiling)
    x2 = jax.random.normal(k2, (3, 5, 7, 11), dtype=jnp.float32)
    gn = lambda t: jnp.tanh(t) * 1.5
    res_gen = Residual(gn)  # fn in JAX, residual add in Pallas (aliased output)
    out2 = jax.block_until_ready(jax.jit(res_gen)(x2))
    ref2 = gn(x2) + x2
    assert out2.shape == x2.shape and out2.dtype == x2.dtype
    assert jnp.allclose(out2, ref2, atol=1e-6, rtol=1e-6)

    # 3) bf16 fused path (dtype-aware sublane-multiple tiling)
    xb = x.astype(jnp.bfloat16)
    outb = jax.block_until_ready(jax.jit(res_fused)(xb))
    refb = fn(xb) + xb
    assert outb.shape == xb.shape and outb.dtype == jnp.bfloat16
    assert jnp.allclose(outb.astype(jnp.float32), refb.astype(jnp.float32),
                        atol=1e-2, rtol=1e-2)

    print("KERNEL_OK")
</pallas_src>

<mosaic_0001>
module attributes {stable_mosaic.version = 11 : i64} {
  func.func @_fused_residual_kernel(%arg0: i32, %arg1: memref<8x128xf32, #tpu.memory_space<vmem>>, %arg2: memref<8x128xf32, #tpu.memory_space<vmem>>) attributes {dimension_semantics = [#tpu.dimension_semantics<parallel>], iteration_bounds = array<i64: 2>, scalar_prefetch = 0 : i64, scratch_operands = 0 : i64, tpu.core_type = #tpu.core_type<tc>, window_params = [{transform_indices = @transform_0, window_bounds = array<i64: 8, 128>}, {transform_indices = @transform_1, window_bounds = array<i64: 8, 128>}]} {
    %c0 = arith.constant 0 : index
    %c0_0 = arith.constant 0 : index
    %0 = vector.load %arg1[%c0, %c0_0] : memref<8x128xf32, #tpu.memory_space<vmem>>, vector<8x128xf32>
    %cst = arith.constant 2.000000e-01 : f32
    %cst_1 = arith.constant 0.000000e+00 : f32
    %1 = vector.broadcast %cst_1 : f32 to vector<8x128xf32>
    %2 = arith.cmpf oge, %0, %1 : vector<8x128xf32>
    %3 = vector.broadcast %cst : f32 to vector<8x128xf32>
    %4 = arith.mulf %3, %0 : vector<8x128xf32>
    %5 = arith.select %2, %0, %4 : vector<8x128xi1>, vector<8x128xf32>
    %6 = arith.addf %5, %0 : vector<8x128xf32>
    %c0_2 = arith.constant 0 : index
    %c0_3 = arith.constant 0 : index
    %7 = vector.load %arg2[%c0_2, %c0_3] : memref<8x128xf32, #tpu.memory_space<vmem>>, vector<8x128xf32>
    tpu.vector_store %arg2[%c0_2, %c0_3], %6 {strides = array<i32>} : memref<8x128xf32, #tpu.memory_space<vmem>>, vector<8x128xf32>,
    return
  }
  func.func @transform_0(%arg0: i32) -> (i32, i32) {
    %c0_i32 = arith.constant 0 : i32
    %c0_i32_0 = arith.constant 0 : i32
    return %arg0, %c0_i32 : i32, i32
  }
  func.func @transform_1(%arg0: i32) -> (i32, i32) {
    %c0_i32 = arith.constant 0 : i32
    %c0_i32_0 = arith.constant 0 : i32
    return %arg0, %c0_i32 : i32, i32
  }
}

</mosaic_0001>

<llo_original>
// kernel: _unnamed_function_.1
$region0: #{_unnamed_function_.1}
  #allocation0 [shape = 'u32[]', space=smem, size = 0x4, offset = 0x4, fixed_abs, tag = 'smem constant byte address 0x4 - core index']
  #allocation1 [shape = 'u32[72,128]{1,0:T(1,128)}', space=vmem, size = 0x9000, scoped, tag = 'internal scratch']
  %s0 = inlined_call_operand.vmem [shape: f32[16,128], index: 0, kind: input, shape index: {}]
  %s1 = inlined_call_operand.vmem [shape: f32[16,128], index: 1, kind: output, shape index: {}]
  %s2 = sld [smem:[#allocation0]]
  $region37: #{_unnamed_function_.1} parent=0
    _
  %s4 = ssub.s32 1, %s2
  %s5 = scalar_select 0, %s4, %s2
  loop: start=0, step=1, limit=4
  $region2: #{_unnamed_function_.1} parent=0 // loop_pre_header
    _
  $region3: #{_unnamed_function_.1} parent=0 // loop_header
    %s7 = sphi 0, %s11
    %p8 = scmp.ge.s32.totalorder %s7, 4
    %s17 = sphi 0, %s19
    %s20 = sphi 0, %s17
    %s21 = sphi 0, %s20
    %s37 = sphi 0, %s21
    %s43 = sphi 0, %s45
    %s46 = sphi 0, %s43
    %s47 = sphi 0, %s46
    %s63 = sphi 0, %s47
  $region4: #{_unnamed_function_.1} parent=0 // loop_header_branch
    %10 = sbr.rel (%p8) target = $region8
  $region5: #{_unnamed_function_.1} parent=0 // loop_body
    %s12 = ssub.s32 %s7, 1
    %s13 = ssub.s32 %s7, 2
    %s14 = sadd.s32 %s7, 1
    %s15 = ssub.s32 %s7, %s14
    %p16 = scmp.eq.s32.totalorder %s15, 0
    %s18 = sadd.s32 %s17, 1
    %s19 = scalar_select %p16, %s17, %s18
    %p22 = pneg %p16
    %p23 = scmp.eq.s32.totalorder %s7, 1
    %p24 = por %p22, %p23
    %p25 = scmp.ne.s32.totalorder %s17, %s20
    %p26 = scmp.eq.s32.totalorder %s7, 0
    %p27 = por %p25, %p26
    %p28 = scmp.ne.s32.totalorder %s17, %s20
    %p29 = scmp.eq.s32.totalorder %s12, 1
    %p30 = por %p28, %p29
    %p31 = scmp.ne.s32.totalorder %s20, %s21
    %p32 = scmp.eq.s32.totalorder %s12, 0
    %p33 = por %p31, %p32
    %p34 = scmp.ne.s32.totalorder %s20, %s21
    %p35 = scmp.eq.s32.totalorder %s13, 1
    %p36 = por %p34, %p35
    %p38 = scmp.ne.s32.totalorder %s21, %s37
    %p39 = scmp.eq.s32.totalorder %s13, 0
    %p40 = por %p38, %p39
    %s41 = ssub.s32 %s7, %s14
    %p42 = scmp.eq.s32.totalorder %s41, 0
    %s44 = sadd.s32 %s43, 1
    %s45 = scalar_select %p42, %s43, %s44
    %p48 = pneg %p42
    %p49 = scmp.eq.s32.totalorder %s7, 1
    %p50 = por %p48, %p49
    %p51 = scmp.ne.s32.totalorder %s43, %s46
    %p52 = scmp.eq.s32.totalorder %s7, 0
    %p53 = por %p51, %p52
    %p54 = scmp.ne.s32.totalorder %s43, %s46
    %p55 = scmp.eq.s32.totalorder %s12, 1
    %p56 = por %p54, %p55
    %p57 = scmp.ne.s32.totalorder %s46, %s47
    %p58 = scmp.eq.s32.totalorder %s12, 0
    %p59 = por %p57, %p58
    %p60 = scmp.ne.s32.totalorder %s46, %s47
    %p61 = scmp.eq.s32.totalorder %s13, 1
    %p62 = por %p60, %p61
    %p64 = scmp.ne.s32.totalorder %s47, %s63
    %p65 = scmp.eq.s32.totalorder %s13, 0
    %p66 = por %p64, %p65
    %p67 = scmp.le.s32.totalorder 1, %s7
    %p68 = scmp.lt.s32.totalorder %s7, 3
    %p69 = pnand %p67, %p68
    %p70 = pneg %p69
    // Predicated region
    $region9: #{_unnamed_function_.1} parent=5 // pred_check
      _
    $region10: #{_unnamed_function_.1} parent=5 // pred_check_branch
      %72 = sbr.rel (%p69) target = $region12
    $region11: #{_unnamed_function_.1} parent=5 // pred_region
      %s73 = ssub.s32 %s7, 1
    $region12: #{_unnamed_function_.1} parent=5 // pred_fallthru
      _
    %p74 = scmp.lt.s32.totalorder %s7, 2
    // Predicated region
    $region13: #{_unnamed_function_.1} parent=5 // pred_check
      %p75 = pneg %p74
    $region14: #{_unnamed_function_.1} parent=5 // pred_check_branch
      %77 = sbr.rel (%p75) target = $region16
    $region15: #{_unnamed_function_.1} parent=5 // pred_region
      // Predicated region
      $region17: #{_unnamed_function_.1} parent=15 // pred_check
        %p78 = pneg %p27
      $region18: #{_unnamed_function_.1} parent=15 // pred_check_branch
        %80 = sbr.rel (%p78) target = $region20
      $region19: #{_unnamed_function_.1} parent=15 // pred_region
        %p81 = scmp.lt.s32.totalorder %s7, 1
        %s82 = scalar_select %p81, %s7, 1
        %s83 = smul.addr %s82, 8
        %s84 = scalar_lea.vmem %s0, %s83
      $region20: #{_unnamed_function_.1} parent=15 // pred_fallthru
        _
    $region16: #{_unnamed_function_.1} parent=5 // pred_fallthru
      _
    %p85 = scmp.le.s32.totalorder 1, %s7
    %p86 = scmp.lt.s32.totalorder %s7, 3
    %p87 = pnand %p85, %p86
    %p88 = pneg %p87
    // Predicated region
    $region21: #{_unnamed_function_.1} parent=5 // pred_check
      _
    $region22: #{_unnamed_function_.1} parent=5 // pred_check_branch
      %90 = sbr.rel (%p87) target = $region24
    $region23: #{_unnamed_function_.1} parent=5 // pred_region
      %s91 = ssub.s32 %s7, 1
      %p92 = scmp.lt.s32.totalorder %s12, 1
      %s93 = scalar_select %p92, %s12, 1
      %s94 = smul.addr %s93, 8
      %s95 = scalar_lea.vmem %s0, %s94
      %p96 = pneg %p33
      %p97 = pneg %p30
      %p98 = pneg %p59
      %p99 = pneg %p56
      %p100 = scmp.lt.s32.totalorder %s12, 1
      %s101 = scalar_select %p100, %s12, 1
      %s102 = smul.addr %s101, 8
      %s103 = scalar_lea.vmem %s1, %s102
      %p104 = scmp.lt.s32.totalorder %s12, 1
      %s105 = scalar_select %p104, %s12, 1
      %s106 = smul.addr %s105, 8
      %s107 = scalar_lea.vmem %s0, %s106
      %p108 = scmp.lt.s32.totalorder %s12, 1
      %s109 = scalar_select %p108, %s12, 1
      %s110 = smul.addr %s109, 8
      %s111 = scalar_lea.vmem %s1, %s110
      %v112 = vld [vmem:[%s107] sm:$0xff]
      %vm113 = vcmp.ge.f32.partialorder %v112, 0.0
      %v114 = vmul.f32 %v112, 0.2
      %v115 = vsel %vm113, %v112, %v114
      %v116 = vadd.f32 %v115, %v112
      %117 = vst [vmem:[%s111] sm:$0xff] %v116
      %p118 = scmp.lt.s32.totalorder %s12, 1
      %s119 = scalar_select %p118, %s12, 1
      %s120 = smul.addr %s119, 8
      %s121 = scalar_lea.vmem %s1, %s120
      // Predicated region
      $region25: #{_unnamed_function_.1} parent=23 // pred_check
        %p122 = pneg %p56
      $region26: #{_unnamed_function_.1} parent=23 // pred_check_branch
        %124 = sbr.rel (%p122) target = $region28
      $region27: #{_unnamed_function_.1} parent=23 // pred_region
        _
      $region28: #{_unnamed_function_.1} parent=23 // pred_fallthru
        _
    $region24: #{_unnamed_function_.1} parent=5 // pred_fallthru
      _
    %p125 = scmp.le.s32.totalorder 2, %s7
    // Predicated region
    $region29: #{_unnamed_function_.1} parent=5 // pred_check
      %p126 = pneg %p125
    $region30: #{_unnamed_function_.1} parent=5 // pred_check_branch
      %128 = sbr.rel (%p126) target = $region32
    $region31: #{_unnamed_function_.1} parent=5 // pred_region
      %s129 = ssub.s32 %s7, 2
      // Predicated region
      $region33: #{_unnamed_function_.1} parent=31 // pred_check
        %p130 = pneg %p62
      $region34: #{_unnamed_function_.1} parent=31 // pred_check_branch
        %132 = sbr.rel (%p130) target = $region36
      $region35: #{_unnamed_function_.1} parent=31 // pred_region
        %p133 = scmp.lt.s32.totalorder %s13, 1
        %s134 = scalar_select %p133, %s13, 1
        %s135 = smul.addr %s134, 8
        %s136 = scalar_lea.vmem %s1, %s135
      $region36: #{_unnamed_function_.1} parent=31 // pred_fallthru
        _
    $region32: #{_unnamed_function_.1} parent=5 // pred_fallthru
      _
  $region6: #{_unnamed_function_.1} parent=0 // loop_footer
    %s11 = sadd.s32 1, %s7
  $region7: #{_unnamed_function_.1} parent=0 // loop_footer_branch
    %6 = sbr.rel target = $region3
  $region8: #{_unnamed_function_.1} parent=0 // loop_exit
    _

</llo_original>
